<compile_context>
chip_gen: v6e
topology: v6e:2x2x1
jax: 0.10.0
libtpu: 0.0.40
codegen_flags: <defaults>
</compile_context>

<pallas_src>
import jax
import jax.numpy as jnp
from jax.experimental import pallas as pl
from jax.experimental.pallas import tpu as pltpu

DEFAULT_TB = 256  # batch tile: multiple of 256 (v7x MXU M) and of 128 (v5e MXU M)


def _round_up(x, m):
    return ((x + m - 1) // m) * m


# ----------------------------------------------------------------------------
# Fused Pallas kernel: embedding (one-hot matmul) + Swish + FC1 + Swish + FC2
# ----------------------------------------------------------------------------
def _text_encoder_kernel(idx_ref, emb_ref, w1_ref, b1_ref, w2_ref, b2_ref, o_ref):
    tb = idx_ref.shape[0]
    V = emb_ref.shape[0]

    # Embedding lookup as one-hot @ table (gather-free, MXU friendly).
    # bf16 MXU operands, f32 accumulation.
    onehot = (idx_ref[...] ==
              jax.lax.broadcasted_iota(jnp.int32, (tb, V), 1)).astype(jnp.bfloat16)
    emb = jnp.dot(onehot, emb_ref[...], preferred_element_type=jnp.float32)

    h = emb * jax.nn.sigmoid(emb)                                        # Swish (f32)

    h = jnp.dot(h.astype(jnp.bfloat16), w1_ref[...],
                preferred_element_type=jnp.float32) + b1_ref[...]
    h = h * jax.nn.sigmoid(h)                                            # Swish (f32)

    y = jnp.dot(h.astype(jnp.bfloat16), w2_ref[...],
                preferred_element_type=jnp.float32) + b2_ref[...]
    o_ref[...] = y.astype(o_ref.dtype)


def _fused_forward(idx2, emb_w, w1_t, b1, w2_t, b2, *, tb):
    Bp = idx2.shape[0]                      # padded batch, Bp % tb == 0
    V, D = emb_w.shape
    H = w1_t.shape[1]
    NO = w2_t.shape[1]
    n_tiles = Bp // tb

    flops = 2 * Bp * (V * D + D * H + H * NO)
    bytes_accessed = (
        Bp * 4                                   # token ids (int32)
        + (V * D + D * H + H * NO) * 2           # bf16 weights
        + (H + NO) * 4                           # f32 biases
        + Bp * NO * 4                            # f32 output
    )
    cost = pl.CostEstimate(flops=flops,
                           bytes_accessed=bytes_accessed,
                           transcendentals=2 * Bp * H)

    return pl.pallas_call(
        _text_encoder_kernel,
        out_shape=jax.ShapeDtypeStruct((Bp, NO), jnp.float32),
        grid=(n_tiles,),
        in_specs=[
            pl.BlockSpec((tb, 1), lambda i: (i, 0)),    # token ids, per batch tile
            pl.BlockSpec((V, D), lambda i: (0, 0)),     # embedding table (VMEM-resident)
            pl.BlockSpec((D, H), lambda i: (0, 0)),     # fc1 weight, K-major (resident)
            pl.BlockSpec((1, H), lambda i: (0, 0)),     # fc1 bias
            pl.BlockSpec((H, NO), lambda i: (0, 0)),    # fc2 weight, K-major (resident)
            pl.BlockSpec((1, NO), lambda i: (0, 0)),    # fc2 bias
        ],
        out_specs=pl.BlockSpec((tb, NO), lambda i: (i, 0)),
        compiler_params=pltpu.CompilerParams(
            dimension_semantics=("parallel",)),
        cost_estimate=cost,
    )(idx2, emb_w, w1_t, b1, w2_t, b2)


# ----------------------------------------------------------------------------
# One-time parameter re-layout + dtype cast (never per forward call)
# ----------------------------------------------------------------------------
def prepare_params(params, n_latents):
    del n_latents  # output stays unpadded at 2*n_latents lanes
    emb_w = jnp.asarray(params["emb_w"], jnp.float32).astype(jnp.bfloat16)   # [10, 512]
    w1_t = jnp.asarray(params["fc1_w"], jnp.float32).T.astype(jnp.bfloat16)  # [512, 512]
    b1 = jnp.asarray(params["fc1_b"], jnp.float32).reshape(1, -1)            # [1, 512]
    w2_t = jnp.asarray(params["fc2_w"], jnp.float32).T.astype(jnp.bfloat16)  # [512, 2L]
    b2 = jnp.asarray(params["fc2_b"], jnp.float32).reshape(1, -1)            # [1, 2L]
    return {"emb_w": emb_w, "w1_t": w1_t, "b1": b1, "w2_t": w2_t, "b2": b2}


# ----------------------------------------------------------------------------
# TextEncoder forward (matches PyTorch module semantics)
# ----------------------------------------------------------------------------
def text_encoder_forward(idx, prepped, n_latents, tb=DEFAULT_TB):
    B = idx.shape[0]
    idx2 = idx.reshape(B, 1).astype(jnp.int32)

    # Pick the batch tile: one sublane-aligned tile for small B, TB-row tiles
    # (weights held VMEM-resident across grid steps) for large B.
    if B >= tb:
        tile = tb
        b_pad = _round_up(B, tb)
    else:
        b_pad = _round_up(max(B, 1), 8)
        tile = b_pad
    if b_pad != B:
        idx2 = jnp.pad(idx2, ((0, b_pad - B), (0, 0)))   # pad with id 0 (valid row)

    y = _fused_forward(idx2, prepped["emb_w"], prepped["w1_t"], prepped["b1"],
                       prepped["w2_t"], prepped["b2"], tb=tile)
    y = y[:B]
    return y[:, :n_latents], y[:, n_latents:]


# ----------------------------------------------------------------------------
# pure-JAX (f32) reference for correctness check
# ----------------------------------------------------------------------------
def reference_forward(idx, params, n_latents):
    def swish(v):
        return v * jax.nn.sigmoid(v)

    emb = params["emb_w"][idx]                               # nn.Embedding
    h = swish(emb)
    h = swish(h @ params["fc1_w"].T + params["fc1_b"])
    y = h @ params["fc2_w"].T + params["fc2_b"]
    return y[:, :n_latents], y[:, n_latents:]


if __name__ == "__main__":
    n_latents = 16
    key = jax.random.PRNGKey(0)
    k_x, k_x2, k1, k2, k3, k4, k5 = jax.random.split(key, 7)

    params = {
        "emb_w": jax.random.normal(k1, (10, 512), jnp.float32) * 0.1,
        "fc1_w": jax.random.normal(k2, (512, 512), jnp.float32) * 0.02,
        "fc1_b": jax.random.normal(k3, (512,), jnp.float32) * 0.01,
        "fc2_w": jax.random.normal(k4, (2 * n_latents, 512), jnp.float32) * 0.02,
        "fc2_b": jax.random.normal(k5, (2 * n_latents,), jnp.float32) * 0.01,
    }
    prepped = prepare_params(params, n_latents)   # one-time re-layout + bf16 cast

    # --- small batch (single tile path), matches nn.Embedding(10, 512) ids ---
    B = 2
    x = jax.random.randint(k_x, (B,), 0, 10)
    mu, logvar = text_encoder_forward(x, prepped, n_latents)
    mu = jax.block_until_ready(mu)
    logvar = jax.block_until_ready(logvar)
    mu_ref, logvar_ref = reference_forward(x, params, n_latents)
    assert mu.shape == (B, n_latents) and logvar.shape == (B, n_latents)
    assert jnp.allclose(mu, mu_ref, atol=5e-3, rtol=5e-2)
    assert jnp.allclose(logvar, logvar_ref, atol=5e-3, rtol=5e-2)

    # --- larger batch exercises the tiled grid (weights VMEM-resident) path ---
    B2 = 300
    x2 = jax.random.randint(k_x2, (B2,), 0, 10)
    mu2, logvar2 = text_encoder_forward(x2, prepped, n_latents)
    mu2 = jax.block_until_ready(mu2)
    logvar2 = jax.block_until_ready(logvar2)
    mu2_ref, logvar2_ref = reference_forward(x2, params, n_latents)
    assert mu2.shape == (B2, n_latents) and logvar2.shape == (B2, n_latents)
    assert jnp.allclose(mu2, mu2_ref, atol=5e-3, rtol=5e-2)
    assert jnp.allclose(logvar2, logvar2_ref, atol=5e-3, rtol=5e-2)

    print("KERNEL_OK")
</pallas_src>

<mosaic_0001>
module attributes {stable_mosaic.version = 11 : i64} {
  func.func @_text_encoder_kernel(%arg0: i32, %arg1: memref<8x1xi32, #tpu.memory_space<vmem>>, %arg2: memref<10x512xbf16, #tpu.memory_space<vmem>>, %arg3: memref<512x512xbf16, #tpu.memory_space<vmem>>, %arg4: memref<1x512xf32, #tpu.memory_space<vmem>>, %arg5: memref<512x32xbf16, #tpu.memory_space<vmem>>, %arg6: memref<1x32xf32, #tpu.memory_space<vmem>>, %arg7: memref<8x32xf32, #tpu.memory_space<vmem>>) attributes {dimension_semantics = [#tpu.dimension_semantics<parallel>], iteration_bounds = array<i64: 1>, scalar_prefetch = 0 : i64, scratch_operands = 0 : i64, tpu.core_type = #tpu.core_type<tc>, window_params = [{transform_indices = @transform_0, window_bounds = array<i64: 8, 1>}, {pipeline_mode = #tpu.pipeline_mode<synchronous>, transform_indices = @transform_1, window_bounds = array<i64: 10, 512>}, {pipeline_mode = #tpu.pipeline_mode<synchronous>, transform_indices = @transform_2, window_bounds = array<i64: 512, 512>}, {pipeline_mode = #tpu.pipeline_mode<synchronous>, transform_indices = @transform_3, window_bounds = array<i64: 1, 512>}, {pipeline_mode = #tpu.pipeline_mode<synchronous>, transform_indices = @transform_4, window_bounds = array<i64: 512, 32>}, {pipeline_mode = #tpu.pipeline_mode<synchronous>, transform_indices = @transform_5, window_bounds = array<i64: 1, 32>}, {transform_indices = @transform_6, window_bounds = array<i64: 8, 32>}]} {
    %c0 = arith.constant 0 : index
    %c0_0 = arith.constant 0 : index
    %0 = vector.load %arg1[%c0, %c0_0] : memref<8x1xi32, #tpu.memory_space<vmem>>, vector<8x1xi32>
    %1 = tpu.iota {dimensions = array<i32: 1>} : vector<8x10xi32>
    %2 = vector.broadcast %0 : vector<8x1xi32> to vector<8x10xi32>
    %3 = arith.cmpi eq, %2, %1 : vector<8x10xi32>
    %4 = arith.extui %3 : vector<8x10xi1> to vector<8x10xi32>
    %5 = arith.sitofp %4 : vector<8x10xi32> to vector<8x10xf32>
    %6 = arith.truncf %5 : vector<8x10xf32> to vector<8x10xbf16>
    %c0_1 = arith.constant 0 : index
    %c0_2 = arith.constant 0 : index
    %7 = vector.load %arg2[%c0_1, %c0_2] : memref<10x512xbf16, #tpu.memory_space<vmem>>, vector<10x512xbf16>
    %cst = arith.constant dense<0.000000e+00> : vector<8x512xf32>
    %8 = tpu.matmul %6, %7, %cst {dimension_numbers = #tpu.dot_dimension_numbers<[1], [0], [0], [1], [0, 0, 1, 1], [], []>} : vector<8x10xbf16>, vector<10x512xbf16>, vector<8x512xf32> -> vector<8x512xf32>
    %9 = arith.negf %8 : vector<8x512xf32>
    %10 = math.exp %9 : vector<8x512xf32>
    %cst_3 = arith.constant 1.000000e+00 : f32
    %11 = vector.broadcast %cst_3 : f32 to vector<8x512xf32>
    %12 = arith.addf %11, %10 : vector<8x512xf32>
    %13 = arith.divf %11, %12 : vector<8x512xf32>
    %14 = arith.mulf %8, %13 : vector<8x512xf32>
    %15 = arith.truncf %14 : vector<8x512xf32> to vector<8x512xbf16>
    %c0_4 = arith.constant 0 : index
    %c0_5 = arith.constant 0 : index
    %16 = vector.load %arg3[%c0_4, %c0_5] : memref<512x512xbf16, #tpu.memory_space<vmem>>, vector<512x512xbf16>
    %cst_6 = arith.constant dense<0.000000e+00> : vector<8x512xf32>
    %17 = tpu.matmul %15, %16, %cst_6 {dimension_numbers = #tpu.dot_dimension_numbers<[1], [0], [0], [1], [0, 0, 1, 1], [], []>} : vector<8x512xbf16>, vector<512x512xbf16>, vector<8x512xf32> -> vector<8x512xf32>
    %c0_7 = arith.constant 0 : index
    %c0_8 = arith.constant 0 : index
    %18 = vector.load %arg4[%c0_7, %c0_8] : memref<1x512xf32, #tpu.memory_space<vmem>>, vector<1x512xf32>
    %19 = vector.broadcast %18 : vector<1x512xf32> to vector<8x512xf32>
    %20 = arith.addf %17, %19 : vector<8x512xf32>
    %21 = arith.negf %20 : vector<8x512xf32>
    %22 = math.exp %21 : vector<8x512xf32>
    %cst_9 = arith.constant 1.000000e+00 : f32
    %23 = vector.broadcast %cst_9 : f32 to vector<8x512xf32>
    %24 = arith.addf %23, %22 : vector<8x512xf32>
    %25 = arith.divf %23, %24 : vector<8x512xf32>
    %26 = arith.mulf %20, %25 : vector<8x512xf32>
    %27 = arith.truncf %26 : vector<8x512xf32> to vector<8x512xbf16>
    %c0_10 = arith.constant 0 : index
    %c0_11 = arith.constant 0 : index
    %28 = vector.load %arg5[%c0_10, %c0_11] : memref<512x32xbf16, #tpu.memory_space<vmem>>, vector<512x32xbf16>
    %cst_12 = arith.constant dense<0.000000e+00> : vector<8x32xf32>
    %29 = tpu.matmul %27, %28, %cst_12 {dimension_numbers = #tpu.dot_dimension_numbers<[1], [0], [0], [1], [0, 0, 1, 1], [], []>} : vector<8x512xbf16>, vector<512x32xbf16>, vector<8x32xf32> -> vector<8x32xf32>
    %c0_13 = arith.constant 0 : index
    %c0_14 = arith.constant 0 : index
    %30 = vector.load %arg6[%c0_13, %c0_14] : memref<1x32xf32, #tpu.memory_space<vmem>>, vector<1x32xf32>
    %31 = vector.broadcast %30 : vector<1x32xf32> to vector<8x32xf32>
    %32 = arith.addf %29, %31 : vector<8x32xf32>
    %c0_15 = arith.constant 0 : index
    %c0_16 = arith.constant 0 : index
    %33 = vector.load %arg7[%c0_15, %c0_16] : memref<8x32xf32, #tpu.memory_space<vmem>>, vector<8x32xf32>
    tpu.vector_store %arg7[%c0_15, %c0_16], %32 {strides = array<i32>} : memref<8x32xf32, #tpu.memory_space<vmem>>, vector<8x32xf32>,
    return
  }
  func.func @transform_0(%arg0: i32) -> (i32, i32) {
    %c0_i32 = arith.constant 0 : i32
    %c0_i32_0 = arith.constant 0 : i32
    return %arg0, %c0_i32 : i32, i32
  }
  func.func @transform_1(%arg0: i32) -> (i32, i32) {
    %c0_i32 = arith.constant 0 : i32
    %c0_i32_0 = arith.constant 0 : i32
    %c0_i32_1 = arith.constant 0 : i32
    return %c0_i32, %c0_i32_0 : i32, i32
  }
  func.func @transform_2(%arg0: i32) -> (i32, i32) {
    %c0_i32 = arith.constant 0 : i32
    %c0_i32_0 = arith.constant 0 : i32
    %c0_i32_1 = arith.constant 0 : i32
    return %c0_i32, %c0_i32_0 : i32, i32
  }
  func.func @transform_3(%arg0: i32) -> (i32, i32) {
    %c0_i32 = arith.constant 0 : i32
    %c0_i32_0 = arith.constant 0 : i32
    %c0_i32_1 = arith.constant 0 : i32
    return %c0_i32, %c0_i32_0 : i32, i32
  }
  func.func @transform_4(%arg0: i32) -> (i32, i32) {
    %c0_i32 = arith.constant 0 : i32
    %c0_i32_0 = arith.constant 0 : i32
    %c0_i32_1 = arith.constant 0 : i32
    return %c0_i32, %c0_i32_0 : i32, i32
  }
  func.func @transform_5(%arg0: i32) -> (i32, i32) {
    %c0_i32 = arith.constant 0 : i32
    %c0_i32_0 = arith.constant 0 : i32
    %c0_i32_1 = arith.constant 0 : i32
    return %c0_i32, %c0_i32_0 : i32, i32
  }
  func.func @transform_6(%arg0: i32) -> (i32, i32) {
    %c0_i32 = arith.constant 0 : i32
    %c0_i32_0 = arith.constant 0 : i32
    return %arg0, %c0_i32 : i32, i32
  }
}

</mosaic_0001>

<llo_original>
// kernel: tpu_custom_call.1
$region0: #{tpu_custom_call.1}
  #allocation0 [shape = 'u32[]', space=smem, size = 0x4, offset = 0x4, fixed_abs, tag = 'smem constant byte address 0x4 - core index']
  #allocation1 [shape = 'u32[144,128]{1,0:T(1,128)}', space=vmem, size = 0x12000, scoped, tag = 'internal scratch']
  %s0 = inlined_call_operand.vmem [shape: s32[8,1], index: 0, kind: input, shape index: {}]
  %s1 = inlined_call_operand.vmem [shape: bf16[10,512], index: 1, kind: input, shape index: {}]
  %s2 = inlined_call_operand.hbm [shape: bf16[512,512], index: 2, kind: input, shape index: {}]
  %s3 = inlined_call_operand.vmem [shape: f32[1,512], index: 3, kind: input, shape index: {}]
  %s4 = inlined_call_operand.vmem [shape: bf16[512,32], index: 4, kind: input, shape index: {}]
  %s5 = inlined_call_operand.vmem [shape: f32[1,32], index: 5, kind: input, shape index: {}]
  %s6 = inlined_call_operand.hbm [shape: f32[8,32], index: 6, kind: output, shape index: {}]
  %s7 = sld [smem:[#allocation0]]
  $region38: #{tpu_custom_call.1} parent=0
    _
  %s9 = ssub.s32 1, %s7
  %s10 = scalar_select 0, %s9, %s7
  $region1: #{tpu_custom_call.1} parent=0
    #allocation2 [shape = 'u8[524288]{0}', space=vmem, size = 0x80000, scoped, tag = 'input window, operand 2, single buffered']
    #allocation3 [shape = 's32[1]{0}', space=sflag, size = 0x4, scoped, tag = 'scoped memory for tpu_custom_call.1']
    #allocation4 [shape = 's32[1]{0}', space=sflag, size = 0x4, scoped, tag = 'scoped memory for tpu_custom_call.1']
    #allocation5 [shape = 'u8[4096]{0}', space=vmem, size = 0x1000, scoped, tag = 'output window, operand 0, single buffered']
    %11 = vsyncpa [#allocation3], 0
    %12 = vsyncpa [#allocation4], 0
    // Predicated region
    $region2: #{tpu_custom_call.1} parent=1 // pred_check
      _
    $region3: #{tpu_custom_call.1} parent=1 // pred_check_branch
      %14 = sbr.rel (0) target = $region5
    $region4: #{tpu_custom_call.1} parent=1 // pred_region
      _
    $region5: #{tpu_custom_call.1} parent=1 // pred_fallthru
      _
    // Predicated region
    $region6: #{tpu_custom_call.1} parent=1 // pred_check
      _
    $region7: #{tpu_custom_call.1} parent=1 // pred_check_branch
      %16 = sbr.rel (0) target = $region9
    $region8: #{tpu_custom_call.1} parent=1 // pred_region
      _
    $region9: #{tpu_custom_call.1} parent=1 // pred_fallthru
      _
    // Predicated region
    $region10: #{tpu_custom_call.1} parent=1 // pred_check
      _
    $region11: #{tpu_custom_call.1} parent=1 // pred_check_branch
      %18 = sbr.rel (0) target = $region13
    $region12: #{tpu_custom_call.1} parent=1 // pred_region
      %s20 = ssub.s32 16384, 16384
      %21 = vsyncadd [#allocation3], %s20
      %s22 = sshll.u32 [#allocation2], 4
      %s23 = int_to_ptr.vmem [resolvable:$true] %s22
      %28 = dma.hbm_to_vmem [thread:$0]  %s2, 16384, %s23, [#allocation3], 256, 256, 16
    $region13: #{tpu_custom_call.1} parent=1 // pred_fallthru
      _
    // Predicated region
    $region14: #{tpu_custom_call.1} parent=1 // pred_check
      _
    $region15: #{tpu_custom_call.1} parent=1 // pred_check_branch
      %30 = sbr.rel (0) target = $region17
    $region16: #{tpu_custom_call.1} parent=1 // pred_region
      _
    $region17: #{tpu_custom_call.1} parent=1 // pred_fallthru
      _
    // Predicated region
    $region18: #{tpu_custom_call.1} parent=1 // pred_check
      _
    $region19: #{tpu_custom_call.1} parent=1 // pred_check_branch
      %32 = sbr.rel (0) target = $region21
    $region20: #{tpu_custom_call.1} parent=1 // pred_region
      _
    $region21: #{tpu_custom_call.1} parent=1 // pred_fallthru
      _
    // Predicated region
    $region22: #{tpu_custom_call.1} parent=1 // pred_check
      _
    $region23: #{tpu_custom_call.1} parent=1 // pred_check_branch
      %34 = sbr.rel (0) target = $region25
    $region24: #{tpu_custom_call.1} parent=1 // pred_region
      _
    $region25: #{tpu_custom_call.1} parent=1 // pred_fallthru
      _
    // Predicated region
    $region26: #{tpu_custom_call.1} parent=1 // pred_check
      _
    $region27: #{tpu_custom_call.1} parent=1 // pred_check_branch
      %36 = sbr.rel (0) target = $region29
    $region28: #{tpu_custom_call.1} parent=1 // pred_region
      %37 = dma.done [#allocation3], 16384
    $region29: #{tpu_custom_call.1} parent=1 // pred_fallthru
      _
    %v39 = vld [vmem:[%s0] sm:$0xff]
    %v40 = vlaneseq
    %v41 = vand.u32 %v40, 127
    %42 = vset.pattern.permute.xlu0 0
    %43 = vperm.xlu0 %42, %v39
    %v44 = vpop.permute.xlu0 %43
    %vm45 = vcmp.eq.s32.totalorder %v44, %v41
    %v46 = vsel %vm45, 1, 0
    %v47 = vcvt.s32.f32 %v46
    %v48 = vpack.c.bf16 %v47, %v47
    %v49 = vld [vmem:[%s1] sm:$0xff]
    %v50 = vld [vmem:[%s1 + $0x8] sm:$0xff]
    %v51 = vld [vmem:[%s1 + $0x10] sm:$0x11]
    %v52 = vld [vmem:[%s1 + $0x18] sm:$0x11]
    %v57 = vunpack.c.l.b16 %v49
    %v58 = vunpack.c.h.b16 %v49
    %v59 = vunpack.c.l.b16 %v50
    %v60 = vunpack.c.h.b16 %v50
    %v61 = vunpack.c.l.b16 %v51
    %v62 = vunpack.c.h.b16 %v51
    %v63 = vunpack.c.l.b16 %v52
    %v64 = vunpack.c.h.b16 %v52
    %v65 = vpack.c.b16 %v61, %v57
    %v66 = vpack.c.b16 %v62, %v58
    %v67 = vpack.c.b16 %v63, %v59
    %v68 = vpack.c.b16 %v64, %v60
    %vm69 = vcmask 80896
    %v71 = vsel %vm69, %v48, 0
    %vm73 = vcmask 1044480
    %v75 = vsel %vm73, %v65, 0
    %v78 = vsel %vm73, %v66, 0
    %v81 = vsel %vm73, %v67, 0
    %v84 = vsel %vm73, %v68, 0
    %86 = vmatprep.subr.bf16.mxu0 0
    %87 = vmatpush1.bf16.msra.mxu0 0
    %88 = vmatprep.subr.bf16.mxu0 0
    %89 = vmatpush1.bf16.msra.mxu0 0
    %90 = vmatprep.subr.bf16.mxu0 0
    %91 = vmatpush1.bf16.msra.mxu0 0
    %92 = vmatprep.subr.bf16.mxu0 0
    %93 = vmatpush1.bf16.msra.mxu0 0
    %94 = vmatprep.subr.bf16.mxu0 0
    %95 = vmatpush1.bf16.msra.mxu0 0
    %96 = vmatprep.subr.bf16.mxu0 0
    %97 = vmatpush1.bf16.msra.mxu0 0
    %98 = vmatprep.subr.bf16.mxu0 0
    %99 = vmatpush1.bf16.msra.mxu0 0
    %100 = vmatprep.subr.bf16.mxu0 %v78
    %101 = vmatpush1.bf16.msra.mxu0 %v75
    %102 = vmatprep.subr.bf16.mxu0 0
    %103 = vmatpush2.bf16.msra.mxu0 0
    %104 = vmatprep.subr.bf16.mxu0 0
    %105 = vmatpush2.bf16.msra.mxu0 0
    %106 = vmatprep.subr.bf16.mxu0 0
    %107 = vmatpush2.bf16.msra.mxu0 0
    %108 = vmatprep.subr.bf16.mxu0 0
    %109 = vmatpush2.bf16.msra.mxu0 0
    %110 = vmatprep.subr.bf16.mxu0 0
    %111 = vmatpush2.bf16.msra.mxu0 0
    %112 = vmatprep.subr.bf16.mxu0 0
    %113 = vmatpush2.bf16.msra.mxu0 0
    %114 = vmatprep.subr.bf16.mxu0 0
    %115 = vmatpush2.bf16.msra.mxu0 0
    %116 = vmatprep.subr.bf16.mxu0 0
    %117 = vmatpush2.bf16.msra.mxu0 0
    %118 = vmatprep.mubr.bf16.mxu0 0
    %119 = vmatmul.mubr.bf16.gmra.mxu0 %v71
    %v120 = vpop.f32.mrf.mxu0
    %v121 = vadd.f32 0.0, %v120
    %v122 = vpop.f32.mrf.mxu0
    %v123 = vadd.f32 0.0, %v122
    %v124 = vpop.f32.mrf.mxu0
    %v125 = vpop.f32.mrf.mxu0
    %126 = vdwg.mxu0
    %127 = vmatprep.subr.bf16.mxu0 0
    %128 = vmatpush1.bf16.msra.mxu0 0
    %129 = vmatprep.subr.bf16.mxu0 0
    %130 = vmatpush1.bf16.msra.mxu0 0
    %131 = vmatprep.subr.bf16.mxu0 0
    %132 = vmatpush1.bf16.msra.mxu0 0
    %133 = vmatprep.subr.bf16.mxu0 0
    %134 = vmatpush1.bf16.msra.mxu0 0
    %135 = vmatprep.subr.bf16.mxu0 0
    %136 = vmatpush1.bf16.msra.mxu0 0
    %137 = vmatprep.subr.bf16.mxu0 0
    %138 = vmatpush1.bf16.msra.mxu0 0
    %139 = vmatprep.subr.bf16.mxu0 0
    %140 = vmatpush1.bf16.msra.mxu0 0
    %141 = vmatprep.subr.bf16.mxu0 %v84
    %142 = vmatpush1.bf16.msra.mxu0 %v81
    %143 = vmatprep.subr.bf16.mxu0 0
    %144 = vmatpush2.bf16.msra.mxu0 0
    %145 = vmatprep.subr.bf16.mxu0 0
    %146 = vmatpush2.bf16.msra.mxu0 0
    %147 = vmatprep.subr.bf16.mxu0 0
    %148 = vmatpush2.bf16.msra.mxu0 0
    %149 = vmatprep.subr.bf16.mxu0 0
    %150 = vmatpush2.bf16.msra.mxu0 0
    %151 = vmatprep.subr.bf16.mxu0 0
    %152 = vmatpush2.bf16.msra.mxu0 0
    %153 = vmatprep.subr.bf16.mxu0 0
    %154 = vmatpush2.bf16.msra.mxu0 0
    %155 = vmatprep.subr.bf16.mxu0 0
    %156 = vmatpush2.bf16.msra.mxu0 0
    %157 = vmatprep.subr.bf16.mxu0 0
    %158 = vmatpush2.bf16.msra.mxu0 0
    %159 = vmatprep.mubr.bf16.mxu0 0
    %160 = vmatmul.mubr.bf16.gmra.mxu0 %v71
    %v161 = vpop.f32.mrf.mxu0
    %v162 = vadd.f32 0.0, %v161
    %v163 = vpop.f32.mrf.mxu0
    %v164 = vadd.f32 0.0, %v163
    %v165 = vpop.f32.mrf.mxu0
    %v166 = vpop.f32.mrf.mxu0
    %167 = vdwg.mxu0
    %v168 = vxor.u32 %v121, 2147483648
    %v169 = vxor.u32 %v123, 2147483648
    %v170 = vxor.u32 %v162, 2147483648
    %v171 = vxor.u32 %v164, 2147483648
    %v172 = vmul.f32 %v168, 1.442695
    %v173 = vpow.pop %v172
    %v174 = vmul.f32 %v169, 1.442695
    %v175 = vpow.pop %v174
    %v176 = vmul.f32 %v170, 1.442695
    %v177 = vpow.pop %v176
    %v178 = vmul.f32 %v171, 1.442695
    %v179 = vpow.pop %v178
    %v180 = vadd.f32 %v173, 1.0
    %v181 = vadd.f32 %v175, 1.0
    %v182 = vadd.f32 %v177, 1.0
    %v183 = vadd.f32 %v179, 1.0
    %v184 = vrcp.pop %v180
    %v185 = vmul.f32 1.0, %v184
    %v186 = vrcp.pop %v181
    %v187 = vmul.f32 1.0, %v186
    %v188 = vrcp.pop %v182
    %v189 = vmul.f32 1.0, %v188
    %v190 = vrcp.pop %v183
    %v191 = vmul.f32 1.0, %v190
    %v192 = vmul.f32 %v121, %v185
    %v193 = vmul.f32 %v123, %v187
    %v194 = vmul.f32 %v162, %v189
    %v195 = vmul.f32 %v164, %v191
    %v196 = vpack.c.bf16 %v192, %v192
    %v197 = vpack.c.bf16 %v193, %v193
    %v198 = vpack.c.bf16 %v194, %v194
    %v199 = vpack.c.bf16 %v195, %v195
    %v200 = vld [vmem:[#allocation2] sm:$0xff]
    %v201 = vld [vmem:[#allocation2 + $0x8] sm:$0xff]
    %v202 = vld [vmem:[#allocation2 + $0x10] sm:$0xff]
    %v203 = vld [vmem:[#allocation2 + $0x18] sm:$0xff]
    %v204 = vld [vmem:[#allocation2 + $0x20] sm:$0xff]
    %v205 = vld [vmem:[#allocation2 + $0x28] sm:$0xff]
    %v206 = vld [vmem:[#allocation2 + $0x30] sm:$0xff]
    %v207 = vld [vmem:[#allocation2 + $0x38] sm:$0xff]
    %v208 = vld [vmem:[#allocation2 + $0x40] sm:$0xff]
    %v209 = vld [vmem:[#allocation2 + $0x48] sm:$0xff]
    %v210 = vld [vmem:[#allocation2 + $0x50] sm:$0xff]
    %v211 = vld [vmem:[#allocation2 + $0x58] sm:$0xff]
    %v212 = vld [vmem:[#allocation2 + $0x60] sm:$0xff]
    %v213 = vld [vmem:[#allocation2 + $0x68] sm:$0xff]
    %v214 = vld [vmem:[#allocation2 + $0x70] sm:$0xff]
    %v215 = vld [vmem:[#allocation2 + $0x78] sm:$0xff]
    %v216 = vld [vmem:[#allocation2 + $0x80] sm:$0xff]
    %v217 = vld [vmem:[#allocation2 + $0x88] sm:$0xff]
    %v218 = vld [vmem:[#allocation2 + $0x90] sm:$0xff]
    %v219 = vld [vmem:[#allocation2 + $0x98] sm:$0xff]
    %v220 = vld [vmem:[#allocation2 + $0xa0] sm:$0xff]
    %v221 = vld [vmem:[#allocation2 + $0xa8] sm:$0xff]
    %v222 = vld [vmem:[#allocation2 + $0xb0] sm:$0xff]
    %v223 = vld [vmem:[#allocation2 + $0xb8] sm:$0xff]
    %v224 = vld [vmem:[#allocation2 + $0xc0] sm:$0xff]
    %v225 = vld [vmem:[#allocation2 + $0xc8] sm:$0xff]
    %v226 = vld [vmem:[#allocation2 + $0xd0] sm:$0xff]
    %v227 = vld [vmem:[#allocation2 + $0xd8] sm:$0xff]
    %v228 = vld [vmem:[#allocation2 + $0xe0] sm:$0xff]
    %v229 = vld [vmem:[#allocation2 + $0xe8] sm:$0xff]
    %v230 = vld [vmem:[#allocation2 + $0xf0] sm:$0xff]
    %v231 = vld [vmem:[#allocation2 + $0xf8] sm:$0xff]
    %v232 = vld [vmem:[#allocation2 + $0x100] sm:$0xff]
    %v233 = vld [vmem:[#allocation2 + $0x108] sm:$0xff]
    %v234 = vld [vmem:[#allocation2 + $0x110] sm:$0xff]
    %v235 = vld [vmem:[#allocation2 + $0x118] sm:$0xff]
    %v236 = vld [vmem:[#allocation2 + $0x120] sm:$0xff]
    %v237 = vld [vmem:[#allocation2 + $0x128] sm:$0xff]
    %v238 = vld [vmem:[#allocation2 + $0x130] sm:$0xff]
    %v239 = vld [vmem:[#allocation2 + $0x138] sm:$0xff]
    %v240 = vld [vmem:[#allocation2 + $0x140] sm:$0xff]
    %v241 = vld [vmem:[#allocation2 + $0x148] sm:$0xff]
    %v242 = vld [vmem:[#allocation2 + $0x150] sm:$0xff]
    %v243 = vld [vmem:[#allocation2 + $0x158] sm:$0xff]
    %v244 = vld [vmem:[#allocation2 + $0x160] sm:$0xff]
    %v245 = vld [vmem:[#allocation2 + $0x168] sm:$0xff]
    %v246 = vld [vmem:[#allocation2 + $0x170] sm:$0xff]
    %v247 = vld [vmem:[#allocation2 + $0x178] sm:$0xff]
    %v248 = vld [vmem:[#allocation2 + $0x180] sm:$0xff]
    %v249 = vld [vmem:[#allocation2 + $0x188] sm:$0xff]
    %v250 = vld [vmem:[#allocation2 + $0x190] sm:$0xff]
    %v251 = vld [vmem:[#allocation2 + $0x198] sm:$0xff]
    %v252 = vld [vmem:[#allocation2 + $0x1a0] sm:$0xff]
    %v253 = vld [vmem:[#allocation2 + $0x1a8] sm:$0xff]
    %v254 = vld [vmem:[#allocation2 + $0x1b0] sm:$0xff]
    %v255 = vld [vmem:[#allocation2 + $0x1b8] sm:$0xff]
    %v256 = vld [vmem:[#allocation2 + $0x1c0] sm:$0xff]
    %v257 = vld [vmem:[#allocation2 + $0x1c8] sm:$0xff]
    %v258 = vld [vmem:[#allocation2 + $0x1d0] sm:$0xff]
    %v259 = vld [vmem:[#allocation2 + $0x1d8] sm:$0xff]
    %v260 = vld [vmem:[#allocation2 + $0x1e0] sm:$0xff]
    %v261 = vld [vmem:[#allocation2 + $0x1e8] sm:$0xff]
    %v262 = vld [vmem:[#allocation2 + $0x1f0] sm:$0xff]
    %v263 = vld [vmem:[#allocation2 + $0x1f8] sm:$0xff]
    %v264 = vld [vmem:[#allocation2 + $0x200] sm:$0xff]
    %v265 = vld [vmem:[#allocation2 + $0x208] sm:$0xff]
    %v266 = vld [vmem:[#allocation2 + $0x210] sm:$0xff]
    %v267 = vld [vmem:[#allocation2 + $0x218] sm:$0xff]
    %v268 = vld [vmem:[#allocation2 + $0x220] sm:$0xff]
    %v269 = vld [vmem:[#allocation2 + $0x228] sm:$0xff]
    %v270 = vld [vmem:[#allocation2 + $0x230] sm:$0xff]
    %v271 = vld [vmem:[#allocation2 + $0x238] sm:$0xff]
    %v272 = vld [vmem:[#allocation2 + $0x240] sm:$0xff]
    %v273 = vld [vmem:[#allocation2 + $0x248] sm:$0xff]
    %v274 = vld [vmem:[#allocation2 + $0x250] sm:$0xff]
    %v275 = vld [vmem:[#allocation2 + $0x258] sm:$0xff]
    %v276 = vld [vmem:[#allocation2 + $0x260] sm:$0xff]
    %v277 = vld [vmem:[#allocation2 + $0x268] sm:$0xff]
    %v278 = vld [vmem:[#allocation2 + $0x270] sm:$0xff]
    %v279 = vld [vmem:[#allocation2 + $0x278] sm:$0xff]
    %v280 = vld [vmem:[#allocation2 + $0x280] sm:$0xff]
    %v281 = vld [vmem:[#allocation2 + $0x288] sm:$0xff]
    %v282 = vld [vmem:[#allocation2 + $0x290] sm:$0xff]
    %v283 = vld [vmem:[#allocation2 + $0x298] sm:$0xff]
    %v284 = vld [vmem:[#allocation2 + $0x2a0] sm:$0xff]
    %v285 = vld [vmem:[#allocation2 + $0x2a8] sm:$0xff]
    %v286 = vld [vmem:[#allocation2 + $0x2b0] sm:$0xff]
    %v287 = vld [vmem:[#allocation2 + $0x2b8] sm:$0xff]
    %v288 = vld [vmem:[#allocation2 + $0x2c0] sm:$0xff]
    %v289 = vld [vmem:[#allocation2 + $0x2c8] sm:$0xff]
    %v290 = vld [vmem:[#allocation2 + $0x2d0] sm:$0xff]
    %v291 = vld [vmem:[#allocation2 + $0x2d8] sm:$0xff]
    %v292 = vld [vmem:[#allocation2 + $0x2e0] sm:$0xff]
    %v293 = vld [vmem:[#allocation2 + $0x2e8] sm:$0xff]
    %v294 = vld [vmem:[#allocation2 + $0x2f0] sm:$0xff]
    %v295 = vld [vmem:[#allocation2 + $0x2f8] sm:$0xff]
    %v296 = vld [vmem:[#allocation2 + $0x300] sm:$0xff]
    %v297 = vld [vmem:[#allocation2 + $0x308] sm:$0xff]
    %v298 = vld [vmem:[#allocation2 + $0x310] sm:$0xff]
    %v299 = vld [vmem:[#allocation2 + $0x318] sm:$0xff]
    %v300 = vld [vmem:[#allocation2 + $0x320] sm:$0xff]
    %v301 = vld [vmem:[#allocation2 + $0x328] sm:$0xff]
    %v302 = vld [vmem:[#allocation2 + $0x330] sm:$0xff]
    %v303 = vld [vmem:[#allocation2 + $0x338] sm:$0xff]
    %v304 = vld [vmem:[#allocation2 + $0x340] sm:$0xff]
    %v305 = vld [vmem:[#allocation2 + $0x348] sm:$0xff]
    %v306 = vld [vmem:[#allocation2 + $0x350] sm:$0xff]
    %v307 = vld [vmem:[#allocation2 + $0x358] sm:$0xff]
    %v308 = vld [vmem:[#allocation2 + $0x360] sm:$0xff]
    %v309 = vld [vmem:[#allocation2 + $0x368] sm:$0xff]
    %v310 = vld [vmem:[#allocation2 + $0x370] sm:$0xff]
    %v311 = vld [vmem:[#allocation2 + $0x378] sm:$0xff]
    %v312 = vld [vmem:[#allocation2 + $0x380] sm:$0xff]
    %v313 = vld [vmem:[#allocation2 + $0x388] sm:$0xff]
    %v314 = vld [vmem:[#allocation2 + $0x390] sm:$0xff]
    %v315 = vld [vmem:[#allocation2 + $0x398] sm:$0xff]
    %v316 = vld [vmem:[#allocation2 + $0x3a0] sm:$0xff]
    %v317 = vld [vmem:[#allocation2 + $0x3a8] sm:$0xff]
    %v318 = vld [vmem:[#allocation2 + $0x3b0] sm:$0xff]
    %v319 = vld [vmem:[#allocation2 + $0x3b8] sm:$0xff]
    %v320 = vld [vmem:[#allocation2 + $0x3c0] sm:$0xff]
    %v321 = vld [vmem:[#allocation2 + $0x3c8] sm:$0xff]
    %v322 = vld [vmem:[#allocation2 + $0x3d0] sm:$0xff]
    %v323 = vld [vmem:[#allocation2 + $0x3d8] sm:$0xff]
    %v324 = vld [vmem:[#allocation2 + $0x3e0] sm:$0xff]
    %v325 = vld [vmem:[#allocation2 + $0x3e8] sm:$0xff]
    %v326 = vld [vmem:[#allocation2 + $0x3f0] sm:$0xff]
    %v327 = vld [vmem:[#allocation2 + $0x3f8] sm:$0xff]
    %v328 = vld [vmem:[%s3] sm:$0xf]
    %v330 = vlaneseq
    %v331 = vshrl.u32 %v330, 7
    %v332 = vsub.s32 0, %v331
    %v333 = vrot.slane %v328, %v332
    %v334 = vlaneseq
    %v335 = vshrl.u32 %v334, 7
    %v336 = vsub.s32 1, %v335
    %v337 = vrot.slane %v328, %v336
    %v338 = vlaneseq
    %v339 = vshrl.u32 %v338, 7
    %v340 = vsub.s32 2, %v339
    %v341 = vrot.slane %v328, %v340
    %v342 = vlaneseq
    %v343 = vshrl.u32 %v342, 7
    %v344 = vsub.s32 3, %v343
    %v345 = vrot.slane %v328, %v344
    %v478 = vunpack.c.l.b16 %v200
    %v479 = vunpack.c.h.b16 %v200
    %v480 = vunpack.c.l.b16 %v201
    %v481 = vunpack.c.h.b16 %v201
    %v482 = vunpack.c.l.b16 %v202
    %v483 = vunpack.c.h.b16 %v202
    %v484 = vunpack.c.l.b16 %v203
    %v485 = vunpack.c.h.b16 %v203
    %v486 = vunpack.c.l.b16 %v204
    %v487 = vunpack.c.h.b16 %v204
    %v488 = vunpack.c.l.b16 %v205
    %v489 = vunpack.c.h.b16 %v205
    %v490 = vunpack.c.l.b16 %v206
    %v491 = vunpack.c.h.b16 %v206
    %v492 = vunpack.c.l.b16 %v207
    %v493 = vunpack.c.h.b16 %v207
    %v494 = vunpack.c.l.b16 %v208
    %v495 = vunpack.c.h.b16 %v208
    %v496 = vunpack.c.l.b16 %v209
    %v497 = vunpack.c.h.b16 %v209
    %v498 = vunpack.c.l.b16 %v210
    %v499 = vunpack.c.h.b16 %v210
    %v500 = vunpack.c.l.b16 %v211
    %v501 = vunpack.c.h.b16 %v211
    %v502 = vunpack.c.l.b16 %v212
    %v503 = vunpack.c.h.b16 %v212
    %v504 = vunpack.c.l.b16 %v213
    %v505 = vunpack.c.h.b16 %v213
    %v506 = vunpack.c.l.b16 %v214
    %v507 = vunpack.c.h.b16 %v214
    %v508 = vunpack.c.l.b16 %v215
    %v509 = vunpack.c.h.b16 %v215
    %v510 = vunpack.c.l.b16 %v216
    %v511 = vunpack.c.h.b16 %v216
    %v512 = vunpack.c.l.b16 %v217
    %v513 = vunpack.c.h.b16 %v217
    %v514 = vunpack.c.l.b16 %v218
    %v515 = vunpack.c.h.b16 %v218
    %v516 = vunpack.c.l.b16 %v219
    %v517 = vunpack.c.h.b16 %v219
    %v518 = vunpack.c.l.b16 %v220
    %v519 = vunpack.c.h.b16 %v220
    %v520 = vunpack.c.l.b16 %v221
    %v521 = vunpack.c.h.b16 %v221
    %v522 = vunpack.c.l.b16 %v222
    %v523 = vunpack.c.h.b16 %v222
    %v524 = vunpack.c.l.b16 %v223
    %v525 = vunpack.c.h.b16 %v223
    %v526 = vunpack.c.l.b16 %v224
    %v527 = vunpack.c.h.b16 %v224
    %v528 = vunpack.c.l.b16 %v225
    %v529 = vunpack.c.h.b16 %v225
    %v530 = vunpack.c.l.b16 %v226
    %v531 = vunpack.c.h.b16 %v226
    %v532 = vunpack.c.l.b16 %v227
    %v533 = vunpack.c.h.b16 %v227
    %v534 = vunpack.c.l.b16 %v228
    %v535 = vunpack.c.h.b16 %v228
    %v536 = vunpack.c.l.b16 %v229
    %v537 = vunpack.c.h.b16 %v229
    %v538 = vunpack.c.l.b16 %v230
    %v539 = vunpack.c.h.b16 %v230
    %v540 = vunpack.c.l.b16 %v231
    %v541 = vunpack.c.h.b16 %v231
    %v542 = vunpack.c.l.b16 %v232
    %v543 = vunpack.c.h.b16 %v232
    %v544 = vunpack.c.l.b16 %v233
    %v545 = vunpack.c.h.b16 %v233
    %v546 = vunpack.c.l.b16 %v234
    %v547 = vunpack.c.h.b16 %v234
    %v548 = vunpack.c.l.b16 %v235
    %v549 = vunpack.c.h.b16 %v235
    %v550 = vunpack.c.l.b16 %v236
    %v551 = vunpack.c.h.b16 %v236
    %v552 = vunpack.c.l.b16 %v237
    %v553 = vunpack.c.h.b16 %v237
    %v554 = vunpack.c.l.b16 %v238
    %v555 = vunpack.c.h.b16 %v238
    %v556 = vunpack.c.l.b16 %v239
    %v557 = vunpack.c.h.b16 %v239
    %v558 = vunpack.c.l.b16 %v240
    %v559 = vunpack.c.h.b16 %v240
    %v560 = vunpack.c.l.b16 %v241
    %v561 = vunpack.c.h.b16 %v241
    %v562 = vunpack.c.l.b16 %v242
    %v563 = vunpack.c.h.b16 %v242
    %v564 = vunpack.c.l.b16 %v243
    %v565 = vunpack.c.h.b16 %v243
    %v566 = vunpack.c.l.b16 %v244
    %v567 = vunpack.c.h.b16 %v244
    %v568 = vunpack.c.l.b16 %v245
    %v569 = vunpack.c.h.b16 %v245
    %v570 = vunpack.c.l.b16 %v246
    %v571 = vunpack.c.h.b16 %v246
    %v572 = vunpack.c.l.b16 %v247
    %v573 = vunpack.c.h.b16 %v247
    %v574 = vunpack.c.l.b16 %v248
    %v575 = vunpack.c.h.b16 %v248
    %v576 = vunpack.c.l.b16 %v249
    %v577 = vunpack.c.h.b16 %v249
    %v578 = vunpack.c.l.b16 %v250
    %v579 = vunpack.c.h.b16 %v250
    %v580 = vunpack.c.l.b16 %v251
    %v581 = vunpack.c.h.b16 %v251
    %v582 = vunpack.c.l.b16 %v252
    %v583 = vunpack.c.h.b16 %v252
    %v584 = vunpack.c.l.b16 %v253
    %v585 = vunpack.c.h.b16 %v253
    %v586 = vunpack.c.l.b16 %v254
    %v587 = vunpack.c.h.b16 %v254
    %v588 = vunpack.c.l.b16 %v255
    %v589 = vunpack.c.h.b16 %v255
    %v590 = vunpack.c.l.b16 %v256
    %v591 = vunpack.c.h.b16 %v256
    %v592 = vunpack.c.l.b16 %v257
    %v593 = vunpack.c.h.b16 %v257
    %v594 = vunpack.c.l.b16 %v258
    %v595 = vunpack.c.h.b16 %v258
    %v596 = vunpack.c.l.b16 %v259
    %v597 = vunpack.c.h.b16 %v259
    %v598 = vunpack.c.l.b16 %v260
    %v599 = vunpack.c.h.b16 %v260
    %v600 = vunpack.c.l.b16 %v261
    %v601 = vunpack.c.h.b16 %v261
    %v602 = vunpack.c.l.b16 %v262
    %v603 = vunpack.c.h.b16 %v262
    %v604 = vunpack.c.l.b16 %v263
    %v605 = vunpack.c.h.b16 %v263
    %v606 = vunpack.c.l.b16 %v264
    %v607 = vunpack.c.h.b16 %v264
    %v608 = vunpack.c.l.b16 %v265
    %v609 = vunpack.c.h.b16 %v265
    %v610 = vunpack.c.l.b16 %v266
    %v611 = vunpack.c.h.b16 %v266
    %v612 = vunpack.c.l.b16 %v267
    %v613 = vunpack.c.h.b16 %v267
    %v614 = vunpack.c.l.b16 %v268
    %v615 = vunpack.c.h.b16 %v268
    %v616 = vunpack.c.l.b16 %v269
    %v617 = vunpack.c.h.b16 %v269
    %v618 = vunpack.c.l.b16 %v270
    %v619 = vunpack.c.h.b16 %v270
    %v620 = vunpack.c.l.b16 %v271
    %v621 = vunpack.c.h.b16 %v271
    %v622 = vunpack.c.l.b16 %v272
    %v623 = vunpack.c.h.b16 %v272
    %v624 = vunpack.c.l.b16 %v273
    %v625 = vunpack.c.h.b16 %v273
    %v626 = vunpack.c.l.b16 %v274
    %v627 = vunpack.c.h.b16 %v274
    %v628 = vunpack.c.l.b16 %v275
    %v629 = vunpack.c.h.b16 %v275
    %v630 = vunpack.c.l.b16 %v276
    %v631 = vunpack.c.h.b16 %v276
    %v632 = vunpack.c.l.b16 %v277
    %v633 = vunpack.c.h.b16 %v277
    %v634 = vunpack.c.l.b16 %v278
    %v635 = vunpack.c.h.b16 %v278
    %v636 = vunpack.c.l.b16 %v279
    %v637 = vunpack.c.h.b16 %v279
    %v638 = vunpack.c.l.b16 %v280
    %v639 = vunpack.c.h.b16 %v280
    %v640 = vunpack.c.l.b16 %v281
    %v641 = vunpack.c.h.b16 %v281
    %v642 = vunpack.c.l.b16 %v282
    %v643 = vunpack.c.h.b16 %v282
    %v644 = vunpack.c.l.b16 %v283
    %v645 = vunpack.c.h.b16 %v283
    %v646 = vunpack.c.l.b16 %v284
    %v647 = vunpack.c.h.b16 %v284
    %v648 = vunpack.c.l.b16 %v285
    %v649 = vunpack.c.h.b16 %v285
    %v650 = vunpack.c.l.b16 %v286
    %v651 = vunpack.c.h.b16 %v286
    %v652 = vunpack.c.l.b16 %v287
    %v653 = vunpack.c.h.b16 %v287
    %v654 = vunpack.c.l.b16 %v288
    %v655 = vunpack.c.h.b16 %v288
    %v656 = vunpack.c.l.b16 %v289
    %v657 = vunpack.c.h.b16 %v289
    %v658 = vunpack.c.l.b16 %v290
    %v659 = vunpack.c.h.b16 %v290
    %v660 = vunpack.c.l.b16 %v291
    %v661 = vunpack.c.h.b16 %v291
    %v662 = vunpack.c.l.b16 %v292
    %v663 = vunpack.c.h.b16 %v292
    %v664 = vunpack.c.l.b16 %v293
    %v665 = vunpack.c.h.b16 %v293
    %v666 = vunpack.c.l.b16 %v294
    %v667 = vunpack.c.h.b16 %v294
    %v668 = vunpack.c.l.b16 %v295
    %v669 = vunpack.c.h.b16 %v295
    %v670 = vunpack.c.l.b16 %v296
    %v671 = vunpack.c.h.b16 %v296
    %v672 = vunpack.c.l.b16 %v297
    %v673 = vunpack.c.h.b16 %v297
    %v674 = vunpack.c.l.b16 %v298
    %v675 = vunpack.c.h.b16 %v298
    %v676 = vunpack.c.l.b16 %v299
    %v677 = vunpack.c.h.b16 %v299
    %v678 = vunpack.c.l.b16 %v300
    %v679 = vunpack.c.h.b16 %v300
    %v680 = vunpack.c.l.b16 %v301
    %v681 = vunpack.c.h.b16 %v301
    %v682 = vunpack.c.l.b16 %v302
    %v683 = vunpack.c.h.b16 %v302
    %v684 = vunpack.c.l.b16 %v303
    %v685 = vunpack.c.h.b16 %v303
    %v686 = vunpack.c.l.b16 %v304
    %v687 = vunpack.c.h.b16 %v304
    %v688 = vunpack.c.l.b16 %v305
    %v689 = vunpack.c.h.b16 %v305
    %v690 = vunpack.c.l.b16 %v306
    %v691 = vunpack.c.h.b16 %v306
    %v692 = vunpack.c.l.b16 %v307
    %v693 = vunpack.c.h.b16 %v307
    %v694 = vunpack.c.l.b16 %v308
    %v695 = vunpack.c.h.b16 %v308
    %v696 = vunpack.c.l.b16 %v309
    %v697 = vunpack.c.h.b16 %v309
    %v698 = vunpack.c.l.b16 %v310
    %v699 = vunpack.c.h.b16 %v310
    %v700 = vunpack.c.l.b16 %v311
    %v701 = vunpack.c.h.b16 %v311
    %v702 = vunpack.c.l.b16 %v312
    %v703 = vunpack.c.h.b16 %v312
    %v704 = vunpack.c.l.b16 %v313
    %v705 = vunpack.c.h.b16 %v313
    %v706 = vunpack.c.l.b16 %v314
    %v707 = vunpack.c.h.b16 %v314
    %v708 = vunpack.c.l.b16 %v315
    %v709 = vunpack.c.h.b16 %v315
    %v710 = vunpack.c.l.b16 %v316
    %v711 = vunpack.c.h.b16 %v316
    %v712 = vunpack.c.l.b16 %v317
    %v713 = vunpack.c.h.b16 %v317
    %v714 = vunpack.c.l.b16 %v318
    %v715 = vunpack.c.h.b16 %v318
    %v716 = vunpack.c.l.b16 %v319
    %v717 = vunpack.c.h.b16 %v319
    %v718 = vunpack.c.l.b16 %v320
    %v719 = vunpack.c.h.b16 %v320
    %v720 = vunpack.c.l.b16 %v321
    %v721 = vunpack.c.h.b16 %v321
    %v722 = vunpack.c.l.b16 %v322
    %v723 = vunpack.c.h.b16 %v322
    %v724 = vunpack.c.l.b16 %v323
    %v725 = vunpack.c.h.b16 %v323
    %v726 = vunpack.c.l.b16 %v324
    %v727 = vunpack.c.h.b16 %v324
    %v728 = vunpack.c.l.b16 %v325
    %v729 = vunpack.c.h.b16 %v325
    %v730 = vunpack.c.l.b16 %v326
    %v731 = vunpack.c.h.b16 %v326
    %v732 = vunpack.c.l.b16 %v327
    %v733 = vunpack.c.h.b16 %v327
    %v734 = vpack.c.b16 %v482, %v478
    %v735 = vpack.c.b16 %v483, %v479
    %v736 = vpack.c.b16 %v484, %v480
    %v737 = vpack.c.b16 %v485, %v481
    %v738 = vpack.c.b16 %v490, %v486
    %v739 = vpack.c.b16 %v491, %v487
    %v740 = vpack.c.b16 %v492, %v488
    %v741 = vpack.c.b16 %v493, %v489
    %v742 = vpack.c.b16 %v498, %v494
    %v743 = vpack.c.b16 %v499, %v495
    %v744 = vpack.c.b16 %v500, %v496
    %v745 = vpack.c.b16 %v501, %v497
    %v746 = vpack.c.b16 %v506, %v502
    %v747 = vpack.c.b16 %v507, %v503
    %v748 = vpack.c.b16 %v508, %v504
    %v749 = vpack.c.b16 %v509, %v505
    %v750 = vpack.c.b16 %v514, %v510
    %v751 = vpack.c.b16 %v515, %v511
    %v752 = vpack.c.b16 %v516, %v512
    %v753 = vpack.c.b16 %v517, %v513
    %v754 = vpack.c.b16 %v522, %v518
    %v755 = vpack.c.b16 %v523, %v519
    %v756 = vpack.c.b16 %v524, %v520
    %v757 = vpack.c.b16 %v525, %v521
    %v758 = vpack.c.b16 %v530, %v526
    %v759 = vpack.c.b16 %v531, %v527
    %v760 = vpack.c.b16 %v532, %v528
    %v761 = vpack.c.b16 %v533, %v529
    %v762 = vpack.c.b16 %v538, %v534
    %v763 = vpack.c.b16 %v539, %v535
    %v764 = vpack.c.b16 %v540, %v536
    %v765 = vpack.c.b16 %v541, %v537
    %v766 = vpack.c.b16 %v546, %v542
    %v767 = vpack.c.b16 %v547, %v543
    %v768 = vpack.c.b16 %v548, %v544
    %v769 = vpack.c.b16 %v549, %v545
    %v770 = vpack.c.b16 %v554, %v550
    %v771 = vpack.c.b16 %v555, %v551
    %v772 = vpack.c.b16 %v556, %v552
    %v773 = vpack.c.b16 %v557, %v553
    %v774 = vpack.c.b16 %v562, %v558
    %v775 = vpack.c.b16 %v563, %v559
    %v776 = vpack.c.b16 %v564, %v560
    %v777 = vpack.c.b16 %v565, %v561
    %v778 = vpack.c.b16 %v570, %v566
    %v779 = vpack.c.b16 %v571, %v567
    %v780 = vpack.c.b16 %v572, %v568
    %v781 = vpack.c.b16 %v573, %v569
    %v782 = vpack.c.b16 %v578, %v574
    %v783 = vpack.c.b16 %v579, %v575
    %v784 = vpack.c.b16 %v580, %v576
    %v785 = vpack.c.b16 %v581, %v577
    %v786 = vpack.c.b16 %v586, %v582
    %v787 = vpack.c.b16 %v587, %v583
    %v788 = vpack.c.b16 %v588, %v584
    %v789 = vpack.c.b16 %v589, %v585
    %v790 = vpack.c.b16 %v594, %v590
    %v791 = vpack.c.b16 %v595, %v591
    %v792 = vpack.c.b16 %v596, %v592
    %v793 = vpack.c.b16 %v597, %v593
    %v794 = vpack.c.b16 %v602, %v598
    %v795 = vpack.c.b16 %v603, %v599
    %v796 = vpack.c.b16 %v604, %v600
    %v797 = vpack.c.b16 %v605, %v601
    %v798 = vpack.c.b16 %v610, %v606
    %v799 = vpack.c.b16 %v611, %v607
    %v800 = vpack.c.b16 %v612, %v608
    %v801 = vpack.c.b16 %v613, %v609
    %v802 = vpack.c.b16 %v618, %v614
    %v803 = vpack.c.b16 %v619, %v615
    %v804 = vpack.c.b16 %v620, %v616
    %v805 = vpack.c.b16 %v621, %v617
    %v806 = vpack.c.b16 %v626, %v622
    %v807 = vpack.c.b16 %v627, %v623
    %v808 = vpack.c.b16 %v628, %v624
    %v809 = vpack.c.b16 %v629, %v625
    %v810 = vpack.c.b16 %v634, %v630
    %v811 = vpack.c.b16 %v635, %v631
    %v812 = vpack.c.b16 %v636, %v632
    %v813 = vpack.c.b16 %v637, %v633
    %v814 = vpack.c.b16 %v642, %v638
    %v815 = vpack.c.b16 %v643, %v639
    %v816 = vpack.c.b16 %v644, %v640
    %v817 = vpack.c.b16 %v645, %v641
    %v818 = vpack.c.b16 %v650, %v646
    %v819 = vpack.c.b16 %v651, %v647
    %v820 = vpack.c.b16 %v652, %v648
    %v821 = vpack.c.b16 %v653, %v649
    %v822 = vpack.c.b16 %v658, %v654
    %v823 = vpack.c.b16 %v659, %v655
    %v824 = vpack.c.b16 %v660, %v656
    %v825 = vpack.c.b16 %v661, %v657
    %v826 = vpack.c.b16 %v666, %v662
    %v827 = vpack.c.b16 %v667, %v663
    %v828 = vpack.c.b16 %v668, %v664
    %v829 = vpack.c.b16 %v669, %v665
    %v830 = vpack.c.b16 %v674, %v670
    %v831 = vpack.c.b16 %v675, %v671
    %v832 = vpack.c.b16 %v676, %v672
    %v833 = vpack.c.b16 %v677, %v673
    %v834 = vpack.c.b16 %v682, %v678
    %v835 = vpack.c.b16 %v683, %v679
    %v836 = vpack.c.b16 %v684, %v680
    %v837 = vpack.c.b16 %v685, %v681
    %v838 = vpack.c.b16 %v690, %v686
    %v839 = vpack.c.b16 %v691, %v687
    %v840 = vpack.c.b16 %v692, %v688
    %v841 = vpack.c.b16 %v693, %v689
    %v842 = vpack.c.b16 %v698, %v694
    %v843 = vpack.c.b16 %v699, %v695
    %v844 = vpack.c.b16 %v700, %v696
    %v845 = vpack.c.b16 %v701, %v697
    %v846 = vpack.c.b16 %v706, %v702
    %v847 = vpack.c.b16 %v707, %v703
    %v848 = vpack.c.b16 %v708, %v704
    %v849 = vpack.c.b16 %v709, %v705
    %v850 = vpack.c.b16 %v714, %v710
    %v851 = vpack.c.b16 %v715, %v711
    %v852 = vpack.c.b16 %v716, %v712
    %v853 = vpack.c.b16 %v717, %v713
    %v854 = vpack.c.b16 %v722, %v718
    %v855 = vpack.c.b16 %v723, %v719
    %v856 = vpack.c.b16 %v724, %v720
    %v857 = vpack.c.b16 %v725, %v721
    %v858 = vpack.c.b16 %v730, %v726
    %v859 = vpack.c.b16 %v731, %v727
    %v860 = vpack.c.b16 %v732, %v728
    %v861 = vpack.c.b16 %v733, %v729
    %990 = vmatprep.subr.bf16.mxu0 %v763
    %991 = vmatpush1.bf16.msra.mxu0 %v762
    %992 = vmatprep.subr.bf16.mxu0 %v759
    %993 = vmatpush1.bf16.msra.mxu0 %v758
    %994 = vmatprep.subr.bf16.mxu0 %v755
    %995 = vmatpush1.bf16.msra.mxu0 %v754
    %996 = vmatprep.subr.bf16.mxu0 %v751
    %997 = vmatpush1.bf16.msra.mxu0 %v750
    %998 = vmatprep.subr.bf16.mxu0 %v747
    %999 = vmatpush1.bf16.msra.mxu0 %v746
    %1000 = vmatprep.subr.bf16.mxu0 %v743
    %1001 = vmatpush1.bf16.msra.mxu0 %v742
    %1002 = vmatprep.subr.bf16.mxu0 %v739
    %1003 = vmatpush1.bf16.msra.mxu0 %v738
    %1004 = vmatprep.subr.bf16.mxu0 %v735
    %1005 = vmatpush1.bf16.msra.mxu0 %v734
    %1006 = vmatprep.subr.bf16.mxu0 %v795
    %1007 = vmatpush2.bf16.msra.mxu0 %v794
    %1008 = vmatprep.subr.bf16.mxu0 %v791
    %1009 = vmatpush2.bf16.msra.mxu0 %v790
    %1010 = vmatprep.subr.bf16.mxu0 %v787
    %1011 = vmatpush2.bf16.msra.mxu0 %v786
    %1012 = vmatprep.subr.bf16.mxu0 %v783
    %1013 = vmatpush2.bf16.msra.mxu0 %v782
    %1014 = vmatprep.subr.bf16.mxu0 %v779
    %1015 = vmatpush2.bf16.msra.mxu0 %v778
    %1016 = vmatprep.subr.bf16.mxu0 %v775
    %1017 = vmatpush2.bf16.msra.mxu0 %v774
    %1018 = vmatprep.subr.bf16.mxu0 %v771
    %1019 = vmatpush2.bf16.msra.mxu0 %v770
    %1020 = vmatprep.subr.bf16.mxu0 %v767
    %1021 = vmatpush2.bf16.msra.mxu0 %v766
    %1022 = vmatprep.mubr.bf16.mxu0 %v197
    %1023 = vmatmul.mubr.bf16.gmra.mxu0 %v196
    %v1024 = vpop.f32.mrf.mxu0
    %v1025 = vadd.f32 %v333, %v1024
    %v1026 = vpop.f32.mrf.mxu0
    %v1027 = vadd.f32 %v337, %v1026
    %v1028 = vpop.f32.mrf.mxu0
    %v1029 = vpop.f32.mrf.mxu0
    %1030 = vdwg.mxu0
    %1031 = vmatprep.subr.bf16.mxu0 %v827
    %1032 = vmatpush1.bf16.msra.mxu0 %v826
    %1033 = vmatprep.subr.bf16.mxu0 %v823
    %1034 = vmatpush1.bf16.msra.mxu0 %v822
    %1035 = vmatprep.subr.bf16.mxu0 %v819
    %1036 = vmatpush1.bf16.msra.mxu0 %v818
    %1037 = vmatprep.subr.bf16.mxu0 %v815
    %1038 = vmatpush1.bf16.msra.mxu0 %v814
    %1039 = vmatprep.subr.bf16.mxu0 %v811
    %1040 = vmatpush1.bf16.msra.mxu0 %v810
    %1041 = vmatprep.subr.bf16.mxu0 %v807
    %1042 = vmatpush1.bf16.msra.mxu0 %v806
    %1043 = vmatprep.subr.bf16.mxu0 %v803
    %1044 = vmatpush1.bf16.msra.mxu0 %v802
    %1045 = vmatprep.subr.bf16.mxu0 %v799
    %1046 = vmatpush1.bf16.msra.mxu0 %v798
    %1047 = vmatprep.subr.bf16.mxu0 %v859
    %1048 = vmatpush2.bf16.msra.mxu0 %v858
    %1049 = vmatprep.subr.bf16.mxu0 %v855
    %1050 = vmatpush2.bf16.msra.mxu0 %v854
    %1051 = vmatprep.subr.bf16.mxu0 %v851
    %1052 = vmatpush2.bf16.msra.mxu0 %v850
    %1053 = vmatprep.subr.bf16.mxu0 %v847
    %1054 = vmatpush2.bf16.msra.mxu0 %v846
    %1055 = vmatprep.subr.bf16.mxu0 %v843
    %1056 = vmatpush2.bf16.msra.mxu0 %v842
    %1057 = vmatprep.subr.bf16.mxu0 %v839
    %1058 = vmatpush2.bf16.msra.mxu0 %v838
    %1059 = vmatprep.subr.bf16.mxu0 %v835
    %1060 = vmatpush2.bf16.msra.mxu0 %v834
    %1061 = vmatprep.subr.bf16.mxu0 %v831
    %1062 = vmatpush2.bf16.msra.mxu0 %v830
    %1063 = vmatprep.mubr.bf16.mxu0 %v199
    %1064 = vmatmul.mubr.bf16.gmra.mxu0 %v198
    %v1065 = vpop.f32.mrf.mxu0
    %v1066 = vadd.f32 %v1025, %v1065
    %v1067 = vpop.f32.mrf.mxu0
    %v1068 = vadd.f32 %v1027, %v1067
    %v1069 = vpop.f32.mrf.mxu0
    %v1070 = vpop.f32.mrf.mxu0
    %1071 = vdwg.mxu0
    %1072 = vmatprep.subr.bf16.mxu0 %v765
    %1073 = vmatpush1.bf16.msra.mxu0 %v764
    %1074 = vmatprep.subr.bf16.mxu0 %v761
    %1075 = vmatpush1.bf16.msra.mxu0 %v760
    %1076 = vmatprep.subr.bf16.mxu0 %v757
    %1077 = vmatpush1.bf16.msra.mxu0 %v756
    %1078 = vmatprep.subr.bf16.mxu0 %v753
    %1079 = vmatpush1.bf16.msra.mxu0 %v752
    %1080 = vmatprep.subr.bf16.mxu0 %v749
    %1081 = vmatpush1.bf16.msra.mxu0 %v748
    %1082 = vmatprep.subr.bf16.mxu0 %v745
    %1083 = vmatpush1.bf16.msra.mxu0 %v744
    %1084 = vmatprep.subr.bf16.mxu0 %v741
    %1085 = vmatpush1.bf16.msra.mxu0 %v740
    %1086 = vmatprep.subr.bf16.mxu0 %v737
    %1087 = vmatpush1.bf16.msra.mxu0 %v736
    %1088 = vmatprep.subr.bf16.mxu0 %v797
    %1089 = vmatpush2.bf16.msra.mxu0 %v796
    %1090 = vmatprep.subr.bf16.mxu0 %v793
    %1091 = vmatpush2.bf16.msra.mxu0 %v792
    %1092 = vmatprep.subr.bf16.mxu0 %v789
    %1093 = vmatpush2.bf16.msra.mxu0 %v788
    %1094 = vmatprep.subr.bf16.mxu0 %v785
    %1095 = vmatpush2.bf16.msra.mxu0 %v784
    %1096 = vmatprep.subr.bf16.mxu0 %v781
    %1097 = vmatpush2.bf16.msra.mxu0 %v780
    %1098 = vmatprep.subr.bf16.mxu0 %v777
    %1099 = vmatpush2.bf16.msra.mxu0 %v776
    %1100 = vmatprep.subr.bf16.mxu0 %v773
    %1101 = vmatpush2.bf16.msra.mxu0 %v772
    %1102 = vmatprep.subr.bf16.mxu0 %v769
    %1103 = vmatpush2.bf16.msra.mxu0 %v768
    %1104 = vmatprep.mubr.bf16.mxu0 %v197
    %1105 = vmatmul.mubr.bf16.gmra.mxu0 %v196
    %v1106 = vpop.f32.mrf.mxu0
    %v1107 = vadd.f32 %v341, %v1106
    %v1108 = vpop.f32.mrf.mxu0
    %v1109 = vadd.f32 %v345, %v1108
    %v1110 = vpop.f32.mrf.mxu0
    %v1111 = vpop.f32.mrf.mxu0
    %1112 = vdwg.mxu0
    %1113 = vmatprep.subr.bf16.mxu0 %v829
    %1114 = vmatpush1.bf16.msra.mxu0 %v828
    %1115 = vmatprep.subr.bf16.mxu0 %v825
    %1116 = vmatpush1.bf16.msra.mxu0 %v824
    %1117 = vmatprep.subr.bf16.mxu0 %v821
    %1118 = vmatpush1.bf16.msra.mxu0 %v820
    %1119 = vmatprep.subr.bf16.mxu0 %v817
    %1120 = vmatpush1.bf16.msra.mxu0 %v816
    %1121 = vmatprep.subr.bf16.mxu0 %v813
    %1122 = vmatpush1.bf16.msra.mxu0 %v812
    %1123 = vmatprep.subr.bf16.mxu0 %v809
    %1124 = vmatpush1.bf16.msra.mxu0 %v808
    %1125 = vmatprep.subr.bf16.mxu0 %v805
    %1126 = vmatpush1.bf16.msra.mxu0 %v804
    %1127 = vmatprep.subr.bf16.mxu0 %v801
    %1128 = vmatpush1.bf16.msra.mxu0 %v800
    %1129 = vmatprep.subr.bf16.mxu0 %v861
    %1130 = vmatpush2.bf16.msra.mxu0 %v860
    %1131 = vmatprep.subr.bf16.mxu0 %v857
    %1132 = vmatpush2.bf16.msra.mxu0 %v856
    %1133 = vmatprep.subr.bf16.mxu0 %v853
    %1134 = vmatpush2.bf16.msra.mxu0 %v852
    %1135 = vmatprep.subr.bf16.mxu0 %v849
    %1136 = vmatpush2.bf16.msra.mxu0 %v848
    %1137 = vmatprep.subr.bf16.mxu0 %v845
    %1138 = vmatpush2.bf16.msra.mxu0 %v844
    %1139 = vmatprep.subr.bf16.mxu0 %v841
    %1140 = vmatpush2.bf16.msra.mxu0 %v840
    %1141 = vmatprep.subr.bf16.mxu0 %v837
    %1142 = vmatpush2.bf16.msra.mxu0 %v836
    %1143 = vmatprep.subr.bf16.mxu0 %v833
    %1144 = vmatpush2.bf16.msra.mxu0 %v832
    %1145 = vmatprep.mubr.bf16.mxu0 %v199
    %1146 = vmatmul.mubr.bf16.gmra.mxu0 %v198
    %v1147 = vpop.f32.mrf.mxu0
    %v1148 = vadd.f32 %v1107, %v1147
    %v1149 = vpop.f32.mrf.mxu0
    %v1150 = vadd.f32 %v1109, %v1149
    %v1151 = vpop.f32.mrf.mxu0
    %v1152 = vpop.f32.mrf.mxu0
    %1153 = vdwg.mxu0
    %v1154 = vxor.u32 %v1066, 2147483648
    %v1155 = vxor.u32 %v1068, 2147483648
    %v1156 = vxor.u32 %v1148, 2147483648
    %v1157 = vxor.u32 %v1150, 2147483648
    %v1158 = vmul.f32 %v1154, 1.442695
    %v1159 = vpow.pop %v1158
    %v1160 = vmul.f32 %v1155, 1.442695
    %v1161 = vpow.pop %v1160
    %v1162 = vmul.f32 %v1156, 1.442695
    %v1163 = vpow.pop %v1162
    %v1164 = vmul.f32 %v1157, 1.442695
    %v1165 = vpow.pop %v1164
    %v1166 = vadd.f32 %v1159, 1.0
    %v1167 = vadd.f32 %v1161, 1.0
    %v1168 = vadd.f32 %v1163, 1.0
    %v1169 = vadd.f32 %v1165, 1.0
    %v1170 = vrcp.pop %v1166
    %v1171 = vmul.f32 1.0, %v1170
    %v1172 = vrcp.pop %v1167
    %v1173 = vmul.f32 1.0, %v1172
    %v1174 = vrcp.pop %v1168
    %v1175 = vmul.f32 1.0, %v1174
    %v1176 = vrcp.pop %v1169
    %v1177 = vmul.f32 1.0, %v1176
    %v1178 = vmul.f32 %v1066, %v1171
    %v1179 = vmul.f32 %v1068, %v1173
    %v1180 = vmul.f32 %v1148, %v1175
    %v1181 = vmul.f32 %v1150, %v1177
    %v1182 = vpack.c.bf16 %v1178, %v1178
    %v1183 = vpack.c.bf16 %v1179, %v1179
    %v1184 = vpack.c.bf16 %v1180, %v1180
    %v1185 = vpack.c.bf16 %v1181, %v1181
    %v1186 = vld [vmem:[%s4] sm:$0xf]
    %v1187 = vld [vmem:[%s4 + $0x4] sm:$0xf]
    %v1188 = vld [vmem:[%s4 + $0x8] sm:$0xf]
    %v1189 = vld [vmem:[%s4 + $0xc] sm:$0xf]
    %v1190 = vld [vmem:[%s4 + $0x10] sm:$0xf]
    %v1191 = vld [vmem:[%s4 + $0x14] sm:$0xf]
    %v1192 = vld [vmem:[%s4 + $0x18] sm:$0xf]
    %v1193 = vld [vmem:[%s4 + $0x1c] sm:$0xf]
    %v1194 = vld [vmem:[%s4 + $0x20] sm:$0xf]
    %v1195 = vld [vmem:[%s4 + $0x24] sm:$0xf]
    %v1196 = vld [vmem:[%s4 + $0x28] sm:$0xf]
    %v1197 = vld [vmem:[%s4 + $0x2c] sm:$0xf]
    %v1198 = vld [vmem:[%s4 + $0x30] sm:$0xf]
    %v1199 = vld [vmem:[%s4 + $0x34] sm:$0xf]
    %v1200 = vld [vmem:[%s4 + $0x38] sm:$0xf]
    %v1201 = vld [vmem:[%s4 + $0x3c] sm:$0xf]
    %v1202 = vld [vmem:[%s4 + $0x40] sm:$0xf]
    %v1203 = vld [vmem:[%s4 + $0x44] sm:$0xf]
    %v1204 = vld [vmem:[%s4 + $0x48] sm:$0xf]
    %v1205 = vld [vmem:[%s4 + $0x4c] sm:$0xf]
    %v1206 = vld [vmem:[%s4 + $0x50] sm:$0xf]
    %v1207 = vld [vmem:[%s4 + $0x54] sm:$0xf]
    %v1208 = vld [vmem:[%s4 + $0x58] sm:$0xf]
    %v1209 = vld [vmem:[%s4 + $0x5c] sm:$0xf]
    %v1210 = vld [vmem:[%s4 + $0x60] sm:$0xf]
    %v1211 = vld [vmem:[%s4 + $0x64] sm:$0xf]
    %v1212 = vld [vmem:[%s4 + $0x68] sm:$0xf]
    %v1213 = vld [vmem:[%s4 + $0x6c] sm:$0xf]
    %v1214 = vld [vmem:[%s4 + $0x70] sm:$0xf]
    %v1215 = vld [vmem:[%s4 + $0x74] sm:$0xf]
    %v1216 = vld [vmem:[%s4 + $0x78] sm:$0xf]
    %v1217 = vld [vmem:[%s4 + $0x7c] sm:$0xf]
    %v1218 = vld [vmem:[%s4 + $0x80] sm:$0xf]
    %v1219 = vld [vmem:[%s4 + $0x84] sm:$0xf]
    %v1220 = vld [vmem:[%s4 + $0x88] sm:$0xf]
    %v1221 = vld [vmem:[%s4 + $0x8c] sm:$0xf]
    %v1222 = vld [vmem:[%s4 + $0x90] sm:$0xf]
    %v1223 = vld [vmem:[%s4 + $0x94] sm:$0xf]
    %v1224 = vld [vmem:[%s4 + $0x98] sm:$0xf]
    %v1225 = vld [vmem:[%s4 + $0x9c] sm:$0xf]
    %v1226 = vld [vmem:[%s4 + $0xa0] sm:$0xf]
    %v1227 = vld [vmem:[%s4 + $0xa4] sm:$0xf]
    %v1228 = vld [vmem:[%s4 + $0xa8] sm:$0xf]
    %v1229 = vld [vmem:[%s4 + $0xac] sm:$0xf]
    %v1230 = vld [vmem:[%s4 + $0xb0] sm:$0xf]
    %v1231 = vld [vmem:[%s4 + $0xb4] sm:$0xf]
    %v1232 = vld [vmem:[%s4 + $0xb8] sm:$0xf]
    %v1233 = vld [vmem:[%s4 + $0xbc] sm:$0xf]
    %v1234 = vld [vmem:[%s4 + $0xc0] sm:$0xf]
    %v1235 = vld [vmem:[%s4 + $0xc4] sm:$0xf]
    %v1236 = vld [vmem:[%s4 + $0xc8] sm:$0xf]
    %v1237 = vld [vmem:[%s4 + $0xcc] sm:$0xf]
    %v1238 = vld [vmem:[%s4 + $0xd0] sm:$0xf]
    %v1239 = vld [vmem:[%s4 + $0xd4] sm:$0xf]
    %v1240 = vld [vmem:[%s4 + $0xd8] sm:$0xf]
    %v1241 = vld [vmem:[%s4 + $0xdc] sm:$0xf]
    %v1242 = vld [vmem:[%s4 + $0xe0] sm:$0xf]
    %v1243 = vld [vmem:[%s4 + $0xe4] sm:$0xf]
    %v1244 = vld [vmem:[%s4 + $0xe8] sm:$0xf]
    %v1245 = vld [vmem:[%s4 + $0xec] sm:$0xf]
    %v1246 = vld [vmem:[%s4 + $0xf0] sm:$0xf]
    %v1247 = vld [vmem:[%s4 + $0xf4] sm:$0xf]
    %v1248 = vld [vmem:[%s4 + $0xf8] sm:$0xf]
    %v1249 = vld [vmem:[%s4 + $0xfc] sm:$0xf]
    %v1250 = vld [vmem:[%s5] sm:$0x1]
    %v1252 = vlaneseq
    %v1253 = vshrl.u32 %v1252, 7
    %v1254 = vsub.s32 0, %v1253
    %v1255 = vrot.slane %v1250, %v1254
    %v1321 = vunpack.c.l.b16 %v1186
    %v1322 = vunpack.c.l.b16 %v1187
    %v1323 = vunpack.c.l.b16 %v1188
    %v1324 = vunpack.c.l.b16 %v1189
    %v1325 = vunpack.c.l.b16 %v1190
    %v1326 = vunpack.c.l.b16 %v1191
    %v1327 = vunpack.c.l.b16 %v1192
    %v1328 = vunpack.c.l.b16 %v1193
    %v1329 = vunpack.c.l.b16 %v1194
    %v1330 = vunpack.c.l.b16 %v1195
    %v1331 = vunpack.c.l.b16 %v1196
    %v1332 = vunpack.c.l.b16 %v1197
    %v1333 = vunpack.c.l.b16 %v1198
    %v1334 = vunpack.c.l.b16 %v1199
    %v1335 = vunpack.c.l.b16 %v1200
    %v1336 = vunpack.c.l.b16 %v1201
    %v1337 = vunpack.c.l.b16 %v1202
    %v1338 = vunpack.c.l.b16 %v1203
    %v1339 = vunpack.c.l.b16 %v1204
    %v1340 = vunpack.c.l.b16 %v1205
    %v1341 = vunpack.c.l.b16 %v1206
    %v1342 = vunpack.c.l.b16 %v1207
    %v1343 = vunpack.c.l.b16 %v1208
    %v1344 = vunpack.c.l.b16 %v1209
    %v1345 = vunpack.c.l.b16 %v1210
    %v1346 = vunpack.c.l.b16 %v1211
    %v1347 = vunpack.c.l.b16 %v1212
    %v1348 = vunpack.c.l.b16 %v1213
    %v1349 = vunpack.c.l.b16 %v1214
    %v1350 = vunpack.c.l.b16 %v1215
    %v1351 = vunpack.c.l.b16 %v1216
    %v1352 = vunpack.c.l.b16 %v1217
    %v1353 = vunpack.c.l.b16 %v1218
    %v1354 = vunpack.c.l.b16 %v1219
    %v1355 = vunpack.c.l.b16 %v1220
    %v1356 = vunpack.c.l.b16 %v1221
    %v1357 = vunpack.c.l.b16 %v1222
    %v1358 = vunpack.c.l.b16 %v1223
    %v1359 = vunpack.c.l.b16 %v1224
    %v1360 = vunpack.c.l.b16 %v1225
    %v1361 = vunpack.c.l.b16 %v1226
    %v1362 = vunpack.c.l.b16 %v1227
    %v1363 = vunpack.c.l.b16 %v1228
    %v1364 = vunpack.c.l.b16 %v1229
    %v1365 = vunpack.c.l.b16 %v1230
    %v1366 = vunpack.c.l.b16 %v1231
    %v1367 = vunpack.c.l.b16 %v1232
    %v1368 = vunpack.c.l.b16 %v1233
    %v1369 = vunpack.c.l.b16 %v1234
    %v1370 = vunpack.c.l.b16 %v1235
    %v1371 = vunpack.c.l.b16 %v1236
    %v1372 = vunpack.c.l.b16 %v1237
    %v1373 = vunpack.c.l.b16 %v1238
    %v1374 = vunpack.c.l.b16 %v1239
    %v1375 = vunpack.c.l.b16 %v1240
    %v1376 = vunpack.c.l.b16 %v1241
    %v1377 = vunpack.c.l.b16 %v1242
    %v1378 = vunpack.c.l.b16 %v1243
    %v1379 = vunpack.c.l.b16 %v1244
    %v1380 = vunpack.c.l.b16 %v1245
    %v1381 = vunpack.c.l.b16 %v1246
    %v1382 = vunpack.c.l.b16 %v1247
    %v1383 = vunpack.c.l.b16 %v1248
    %v1384 = vunpack.c.l.b16 %v1249
    %v1385 = vpack.c.b16 %v1322, %v1321
    %v1386 = vpack.c.b16 %v1324, %v1323
    %v1387 = vpack.c.b16 %v1326, %v1325
    %v1388 = vpack.c.b16 %v1328, %v1327
    %v1389 = vpack.c.b16 %v1330, %v1329
    %v1390 = vpack.c.b16 %v1332, %v1331
    %v1391 = vpack.c.b16 %v1334, %v1333
    %v1392 = vpack.c.b16 %v1336, %v1335
    %v1393 = vpack.c.b16 %v1338, %v1337
    %v1394 = vpack.c.b16 %v1340, %v1339
    %v1395 = vpack.c.b16 %v1342, %v1341
    %v1396 = vpack.c.b16 %v1344, %v1343
    %v1397 = vpack.c.b16 %v1346, %v1345
    %v1398 = vpack.c.b16 %v1348, %v1347
    %v1399 = vpack.c.b16 %v1350, %v1349
    %v1400 = vpack.c.b16 %v1352, %v1351
    %v1401 = vpack.c.b16 %v1354, %v1353
    %v1402 = vpack.c.b16 %v1356, %v1355
    %v1403 = vpack.c.b16 %v1358, %v1357
    %v1404 = vpack.c.b16 %v1360, %v1359
    %v1405 = vpack.c.b16 %v1362, %v1361
    %v1406 = vpack.c.b16 %v1364, %v1363
    %v1407 = vpack.c.b16 %v1366, %v1365
    %v1408 = vpack.c.b16 %v1368, %v1367
    %v1409 = vpack.c.b16 %v1370, %v1369
    %v1410 = vpack.c.b16 %v1372, %v1371
    %v1411 = vpack.c.b16 %v1374, %v1373
    %v1412 = vpack.c.b16 %v1376, %v1375
    %v1413 = vpack.c.b16 %v1378, %v1377
    %v1414 = vpack.c.b16 %v1380, %v1379
    %v1415 = vpack.c.b16 %v1382, %v1381
    %v1416 = vpack.c.b16 %v1384, %v1383
    %1449 = vmatprep.subr.bf16.mxu0 0
    %1450 = vmatpush1.bf16.msra.mxu0 %v1392
    %1451 = vmatprep.subr.bf16.mxu0 0
    %1452 = vmatpush1.bf16.msra.mxu0 %v1391
    %1453 = vmatprep.subr.bf16.mxu0 0
    %1454 = vmatpush1.bf16.msra.mxu0 %v1390
    %1455 = vmatprep.subr.bf16.mxu0 0
    %1456 = vmatpush1.bf16.msra.mxu0 %v1389
    %1457 = vmatprep.subr.bf16.mxu0 0
    %1458 = vmatpush1.bf16.msra.mxu0 %v1388
    %1459 = vmatprep.subr.bf16.mxu0 0
    %1460 = vmatpush1.bf16.msra.mxu0 %v1387
    %1461 = vmatprep.subr.bf16.mxu0 0
    %1462 = vmatpush1.bf16.msra.mxu0 %v1386
    %1463 = vmatprep.subr.bf16.mxu0 0
    %1464 = vmatpush1.bf16.msra.mxu0 %v1385
    %1465 = vmatprep.subr.bf16.mxu0 0
    %1466 = vmatpush2.bf16.msra.mxu0 %v1400
    %1467 = vmatprep.subr.bf16.mxu0 0
    %1468 = vmatpush2.bf16.msra.mxu0 %v1399
    %1469 = vmatprep.subr.bf16.mxu0 0
    %1470 = vmatpush2.bf16.msra.mxu0 %v1398
    %1471 = vmatprep.subr.bf16.mxu0 0
    %1472 = vmatpush2.bf16.msra.mxu0 %v1397
    %1473 = vmatprep.subr.bf16.mxu0 0
    %1474 = vmatpush2.bf16.msra.mxu0 %v1396
    %1475 = vmatprep.subr.bf16.mxu0 0
    %1476 = vmatpush2.bf16.msra.mxu0 %v1395
    %1477 = vmatprep.subr.bf16.mxu0 0
    %1478 = vmatpush2.bf16.msra.mxu0 %v1394
    %1479 = vmatprep.subr.bf16.mxu0 0
    %1480 = vmatpush2.bf16.msra.mxu0 %v1393
    %1481 = vmatprep.mubr.bf16.mxu0 %v1183
    %1482 = vmatmul.mubr.bf16.gmra.mxu0 %v1182
    %v1483 = vpop.f32.mrf.mxu0
    %v1484 = vadd.f32 %v1255, %v1483
    %v1485 = vpop.f32.mrf.mxu0
    %v1486 = vpop.f32.mrf.mxu0
    %v1487 = vpop.f32.mrf.mxu0
    %1488 = vdwg.mxu0
    %1489 = vmatprep.subr.bf16.mxu0 0
    %1490 = vmatpush1.bf16.msra.mxu0 %v1408
    %1491 = vmatprep.subr.bf16.mxu0 0
    %1492 = vmatpush1.bf16.msra.mxu0 %v1407
    %1493 = vmatprep.subr.bf16.mxu0 0
    %1494 = vmatpush1.bf16.msra.mxu0 %v1406
    %1495 = vmatprep.subr.bf16.mxu0 0
    %1496 = vmatpush1.bf16.msra.mxu0 %v1405
    %1497 = vmatprep.subr.bf16.mxu0 0
    %1498 = vmatpush1.bf16.msra.mxu0 %v1404
    %1499 = vmatprep.subr.bf16.mxu0 0
    %1500 = vmatpush1.bf16.msra.mxu0 %v1403
    %1501 = vmatprep.subr.bf16.mxu0 0
    %1502 = vmatpush1.bf16.msra.mxu0 %v1402
    %1503 = vmatprep.subr.bf16.mxu0 0
    %1504 = vmatpush1.bf16.msra.mxu0 %v1401
    %1505 = vmatprep.subr.bf16.mxu0 0
    %1506 = vmatpush2.bf16.msra.mxu0 %v1416
    %1507 = vmatprep.subr.bf16.mxu0 0
    %1508 = vmatpush2.bf16.msra.mxu0 %v1415
    %1509 = vmatprep.subr.bf16.mxu0 0
    %1510 = vmatpush2.bf16.msra.mxu0 %v1414
    %1511 = vmatprep.subr.bf16.mxu0 0
    %1512 = vmatpush2.bf16.msra.mxu0 %v1413
    %1513 = vmatprep.subr.bf16.mxu0 0
    %1514 = vmatpush2.bf16.msra.mxu0 %v1412
    %1515 = vmatprep.subr.bf16.mxu0 0
    %1516 = vmatpush2.bf16.msra.mxu0 %v1411
    %1517 = vmatprep.subr.bf16.mxu0 0
    %1518 = vmatpush2.bf16.msra.mxu0 %v1410
    %1519 = vmatprep.subr.bf16.mxu0 0
    %1520 = vmatpush2.bf16.msra.mxu0 %v1409
    %1521 = vmatprep.mubr.bf16.mxu0 %v1185
    %1522 = vmatmul.mubr.bf16.gmra.mxu0 %v1184
    %v1523 = vpop.f32.mrf.mxu0
    %v1524 = vadd.f32 %v1484, %v1523
    %v1525 = vpop.f32.mrf.mxu0
    %v1526 = vpop.f32.mrf.mxu0
    %v1527 = vpop.f32.mrf.mxu0
    %1528 = vdwg.mxu0
    %vm1529 = vcmask 261120
    %1530 = vst.msk [vmem:[#allocation5] sm:$0xff] %vm1529, %v1524
    // Predicated region
    $region30: #{tpu_custom_call.1} parent=1 // pred_check
      _
    $region31: #{tpu_custom_call.1} parent=1 // pred_check_branch
      %1532 = sbr.rel (0) target = $region33
    $region32: #{tpu_custom_call.1} parent=1 // pred_region
      %s1534 = ssub.s32 128, 128
      %1535 = vsyncadd [#allocation4], %s1534
      %s1537 = sshll.u32 [#allocation5], 4
      %s1538 = int_to_ptr.vmem [resolvable:$true] %s1537
      %1540 = dma.vmem_to_hbm [thread:$0]  %s1538, 128, %s6, [#allocation4]
    $region33: #{tpu_custom_call.1} parent=1 // pred_fallthru
      _
    // Predicated region
    $region34: #{tpu_custom_call.1} parent=1 // pred_check
      _
    $region35: #{tpu_custom_call.1} parent=1 // pred_check_branch
      %1542 = sbr.rel (0) target = $region37
    $region36: #{tpu_custom_call.1} parent=1 // pred_region
      %1543 = dma.done [#allocation4], 128
    $region37: #{tpu_custom_call.1} parent=1 // pred_fallthru
      _
    %1544 = vsyncpa [#allocation3], 1
    %1545 = vsyncpa [#allocation4], 1

</llo_original>
